<compile_context>
chip_gen: v7x
topology: tpu7x:2x2x1
jax: 0.10.0
libtpu: 0.0.40
codegen_flags: <defaults>
</compile_context>

<pallas_src>
import jax
import jax.numpy as jnp
from jax.experimental import pallas as pl
from jax.experimental.pallas import tpu as pltpu


def _add_one_kernel(x_ref, o_ref):
    o_ref[...] = x_ref[...] + 1


# Inputs at or below this many bytes take the single-block (no-grid) path.
_SMALL_BYTES = 512 * 1024
# Lane-dense column width for the tiled path (multiple of 128).
_LANE = 1024
# Target block size in bytes for the tiled path (~2 MiB).
_TARGET_BLOCK_BYTES = 2 << 20


def add_one(x):
    """Elementwise x + 1 via a Pallas TPU kernel. Accepts any-rank input."""
    orig_shape = x.shape
    dtype = x.dtype
    itemsize = jnp.dtype(dtype).itemsize

    n = x.size
    if n == 0:
        return x

    if n * itemsize <= _SMALL_BYTES:
        # ---- Small path: one whole-array block, no grid. ----
        if x.ndim >= 2:
            # Block shape == full array shape, so the (8,128) divisibility
            # constraint does not apply; no reshape / pad needed.
            return pl.pallas_call(
                _add_one_kernel,
                out_shape=jax.ShapeDtypeStruct(orig_shape, dtype),
            )(x)

        # Rank 0/1: present as a small 2D slab (rows, 128).
        lane = 128
        flat = x.reshape(-1)
        rows = -(-n // lane)
        padded_n = rows * lane
        if padded_n != n:
            flat = jnp.pad(flat, (0, padded_n - n))
        out2d = pl.pallas_call(
            _add_one_kernel,
            out_shape=jax.ShapeDtypeStruct((rows, lane), dtype),
        )(flat.reshape(rows, lane))
        out_flat = out2d.reshape(-1)
        if padded_n != n:
            out_flat = out_flat[:n]
        return out_flat.reshape(orig_shape)

    # ---- Large path: lane-dense slab, ~2 MiB blocks, 1-D parallel grid. ----
    flat = x.reshape(-1)
    tile_r = max(8, (_TARGET_BLOCK_BYTES // (_LANE * itemsize)) // 8 * 8)
    block_elems = tile_r * _LANE
    num_blocks = -(-n // block_elems)
    padded_n = num_blocks * block_elems
    if padded_n != n:
        flat = jnp.pad(flat, (0, padded_n - n))
    rows = padded_n // _LANE
    x2d = flat.reshape(rows, _LANE)

    block_bytes = block_elems * itemsize
    # Double-buffered input + double-buffered output, plus headroom.
    vmem_limit = max(6 * block_bytes, 16 << 20)

    out2d = pl.pallas_call(
        _add_one_kernel,
        out_shape=jax.ShapeDtypeStruct((rows, _LANE), dtype),
        grid_spec=pltpu.PrefetchScalarGridSpec(
            num_scalar_prefetch=0,
            grid=(num_blocks,),
            in_specs=[pl.BlockSpec((tile_r, _LANE), lambda i: (i, 0))],
            out_specs=pl.BlockSpec((tile_r, _LANE), lambda i: (i, 0)),
        ),
        compiler_params=pltpu.CompilerParams(
            dimension_semantics=("parallel",),
            vmem_limit_bytes=vmem_limit,
        ),
    )(x2d)

    out_flat = out2d.reshape(-1)
    if padded_n != n:
        out_flat = out_flat[:n]
    return out_flat.reshape(orig_shape)


if __name__ == "__main__":
    key = jax.random.PRNGKey(0)

    # Small NCHW-style input consistent with the module's forward (single-block path).
    x = jax.random.normal(key, (2, 4, 16, 16), dtype=jnp.float32)
    y = add_one(x)
    jax.block_until_ready(y)
    ref = x + 1
    assert y.shape == ref.shape and y.dtype == ref.dtype
    assert jnp.allclose(y, ref), "mismatch vs reference (small path)"

    # Secondary check exercising the tiled lane-dense path (modest: ~4 MiB, ragged).
    x_big = jax.random.normal(jax.random.PRNGKey(0), (4, 8, 128, 257), dtype=jnp.float32)
    y_big = add_one(x_big)
    jax.block_until_ready(y_big)
    ref_big = x_big + 1
    assert y_big.shape == ref_big.shape and y_big.dtype == ref_big.dtype
    assert jnp.allclose(y_big, ref_big), "mismatch vs reference (tiled path)"

    print("KERNEL_OK")
</pallas_src>

<mosaic_0001>
module attributes {stable_mosaic.version = 11 : i64} {
  func.func @_add_one_kernel(%arg0: memref<2x4x16x16xf32, #tpu.memory_space<vmem>>, %arg1: memref<2x4x16x16xf32, #tpu.memory_space<vmem>>) attributes {dimension_semantics = [], scalar_prefetch = 0 : i64, scratch_operands = 0 : i64, tpu.core_type = #tpu.core_type<tc>} {
    %c0 = arith.constant 0 : index
    %c0_0 = arith.constant 0 : index
    %c0_1 = arith.constant 0 : index
    %c0_2 = arith.constant 0 : index
    %0 = vector.load %arg0[%c0, %c0_0, %c0_1, %c0_2] : memref<2x4x16x16xf32, #tpu.memory_space<vmem>>, vector<2x4x16x16xf32>
    %cst = arith.constant 1.000000e+00 : f32
    %1 = vector.broadcast %cst : f32 to vector<2x4x16x16xf32>
    %2 = arith.addf %0, %1 : vector<2x4x16x16xf32>
    %c0_3 = arith.constant 0 : index
    %c0_4 = arith.constant 0 : index
    %c0_5 = arith.constant 0 : index
    %c0_6 = arith.constant 0 : index
    %3 = vector.load %arg1[%c0_3, %c0_4, %c0_5, %c0_6] : memref<2x4x16x16xf32, #tpu.memory_space<vmem>>, vector<2x4x16x16xf32>
    tpu.vector_store %arg1[%c0_3, %c0_4, %c0_5, %c0_6], %2 {strides = array<i32>} : memref<2x4x16x16xf32, #tpu.memory_space<vmem>>, vector<2x4x16x16xf32>,
    return
  }
}

</mosaic_0001>

<llo_original>
// kernel: tpu_custom_call.1
$region0: #{tpu_custom_call.1}
  #allocation0 [shape = 'u32[]', space=smem, size = 0x4, offset = 0x4, fixed_abs, tag = 'smem constant byte address 0x4 - core index']
  #allocation1 [shape = 'u32[144,128]{1,0:T(1,128)}', space=vmem, size = 0x12000, scoped, tag = 'internal scratch']
  %s0 = inlined_call_operand.hbm [shape: f32[2,4,16,16], index: 0, kind: input, shape index: {}]
  %s1 = inlined_call_operand.hbm [shape: f32[2,4,16,16], index: 1, kind: output, shape index: {}]
  %s2 = sld [smem:[#allocation0]]
  $region18: #{tpu_custom_call.1} parent=0
    _
  %s4 = ssub.s32 1, %s2
  %s5 = scalar_select 0, %s4, %s2
  $region1: #{tpu_custom_call.1} parent=0
    #allocation2 [shape = 'u8[65536]{0}', space=vmem, size = 0x10000, scoped, tag = 'input window, operand 0, single buffered']
    #allocation3 [shape = 's32[1]{0}', space=sflag, size = 0x4, scoped, tag = 'scoped memory for tpu_custom_call.1']
    #allocation4 [shape = 's32[1]{0}', space=sflag, size = 0x4, scoped, tag = 'scoped memory for tpu_custom_call.1']
    #allocation5 [shape = 'u8[65536]{0}', space=vmem, size = 0x10000, scoped, tag = 'output window, operand 0, single buffered']
    %6 = vsyncpa [#allocation3], 0
    %7 = vsyncpa [#allocation4], 0
    // Predicated region
    $region2: #{tpu_custom_call.1} parent=1 // pred_check
      _
    $region3: #{tpu_custom_call.1} parent=1 // pred_check_branch
      %9 = sbr.rel (0) target = $region5
    $region4: #{tpu_custom_call.1} parent=1 // pred_region
      %s11 = ssub.s32 2048, 2048
      %12 = vsyncadd [#allocation3], %s11
      %s13 = sshll.u32 [#allocation2], 4
      %s14 = int_to_ptr.vmem [resolvable:$true] %s13
      %19 = dma.hbm_to_vmem [thread:$0]  %s0, 2048, %s14, [#allocation3], 128, 128, 8
    $region5: #{tpu_custom_call.1} parent=1 // pred_fallthru
      _
    // Predicated region
    $region6: #{tpu_custom_call.1} parent=1 // pred_check
      _
    $region7: #{tpu_custom_call.1} parent=1 // pred_check_branch
      %21 = sbr.rel (0) target = $region9
    $region8: #{tpu_custom_call.1} parent=1 // pred_region
      %22 = dma.done [#allocation3], 2048
    $region9: #{tpu_custom_call.1} parent=1 // pred_fallthru
      _
    %v23 = vld [vmem:[#allocation2] sm:$0xff]
    %v24 = vld [vmem:[#allocation2 + $0x8] sm:$0xff]
    %v25 = vld [vmem:[#allocation2 + $0x10] sm:$0xff]
    %v26 = vld [vmem:[#allocation2 + $0x18] sm:$0xff]
    %v27 = vld [vmem:[#allocation2 + $0x20] sm:$0xff]
    %v28 = vld [vmem:[#allocation2 + $0x28] sm:$0xff]
    %v29 = vld [vmem:[#allocation2 + $0x30] sm:$0xff]
    %v30 = vld [vmem:[#allocation2 + $0x38] sm:$0xff]
    %v31 = vld [vmem:[#allocation2 + $0x40] sm:$0xff]
    %v32 = vld [vmem:[#allocation2 + $0x48] sm:$0xff]
    %v33 = vld [vmem:[#allocation2 + $0x50] sm:$0xff]
    %v34 = vld [vmem:[#allocation2 + $0x58] sm:$0xff]
    %v35 = vld [vmem:[#allocation2 + $0x60] sm:$0xff]
    %v36 = vld [vmem:[#allocation2 + $0x68] sm:$0xff]
    %v37 = vld [vmem:[#allocation2 + $0x70] sm:$0xff]
    %v38 = vld [vmem:[#allocation2 + $0x78] sm:$0xff]
    %v39 = vadd.f32 %v23, 1.0
    %v40 = vadd.f32 %v24, 1.0
    %v41 = vadd.f32 %v25, 1.0
    %v42 = vadd.f32 %v26, 1.0
    %v43 = vadd.f32 %v27, 1.0
    %v44 = vadd.f32 %v28, 1.0
    %v45 = vadd.f32 %v29, 1.0
    %v46 = vadd.f32 %v30, 1.0
    %v47 = vadd.f32 %v31, 1.0
    %v48 = vadd.f32 %v32, 1.0
    %v49 = vadd.f32 %v33, 1.0
    %v50 = vadd.f32 %v34, 1.0
    %v51 = vadd.f32 %v35, 1.0
    %v52 = vadd.f32 %v36, 1.0
    %v53 = vadd.f32 %v37, 1.0
    %v54 = vadd.f32 %v38, 1.0
    %vm55 = vcmask 130048
    %56 = vst.msk [vmem:[#allocation5] sm:$0xff] %vm55, %v39
    %57 = vst.msk [vmem:[#allocation5 + $0x8] sm:$0xff] %vm55, %v40
    %58 = vst.msk [vmem:[#allocation5 + $0x10] sm:$0xff] %vm55, %v41
    %59 = vst.msk [vmem:[#allocation5 + $0x18] sm:$0xff] %vm55, %v42
    %60 = vst.msk [vmem:[#allocation5 + $0x20] sm:$0xff] %vm55, %v43
    %61 = vst.msk [vmem:[#allocation5 + $0x28] sm:$0xff] %vm55, %v44
    %62 = vst.msk [vmem:[#allocation5 + $0x30] sm:$0xff] %vm55, %v45
    %63 = vst.msk [vmem:[#allocation5 + $0x38] sm:$0xff] %vm55, %v46
    %64 = vst.msk [vmem:[#allocation5 + $0x40] sm:$0xff] %vm55, %v47
    %65 = vst.msk [vmem:[#allocation5 + $0x48] sm:$0xff] %vm55, %v48
    %66 = vst.msk [vmem:[#allocation5 + $0x50] sm:$0xff] %vm55, %v49
    %67 = vst.msk [vmem:[#allocation5 + $0x58] sm:$0xff] %vm55, %v50
    %68 = vst.msk [vmem:[#allocation5 + $0x60] sm:$0xff] %vm55, %v51
    %69 = vst.msk [vmem:[#allocation5 + $0x68] sm:$0xff] %vm55, %v52
    %70 = vst.msk [vmem:[#allocation5 + $0x70] sm:$0xff] %vm55, %v53
    %71 = vst.msk [vmem:[#allocation5 + $0x78] sm:$0xff] %vm55, %v54
    // Predicated region
    $region10: #{tpu_custom_call.1} parent=1 // pred_check
      _
    $region11: #{tpu_custom_call.1} parent=1 // pred_check_branch
      %73 = sbr.rel (0) target = $region13
    $region12: #{tpu_custom_call.1} parent=1 // pred_region
      %s75 = ssub.s32 2048, 2048
      %76 = vsyncadd [#allocation4], %s75
      %s77 = sshll.u32 [#allocation5], 4
      %s78 = int_to_ptr.vmem [resolvable:$true] %s77
      %83 = dma.vmem_to_hbm [thread:$0]  %s78, 2048, %s1, [#allocation4], 128, 128, 8
    $region13: #{tpu_custom_call.1} parent=1 // pred_fallthru
      _
    // Predicated region
    $region14: #{tpu_custom_call.1} parent=1 // pred_check
      _
    $region15: #{tpu_custom_call.1} parent=1 // pred_check_branch
      %85 = sbr.rel (0) target = $region17
    $region16: #{tpu_custom_call.1} parent=1 // pred_region
      %86 = dma.done [#allocation4], 2048
    $region17: #{tpu_custom_call.1} parent=1 // pred_fallthru
      _
    %87 = vsyncpa [#allocation3], 1
    %88 = vsyncpa [#allocation4], 1

</llo_original>
